<compile_context>
chip_gen: v5e
topology: v5e:2x2
jax: 0.10.0
libtpu: 0.0.40
codegen_flags: <defaults>
</compile_context>

<pallas_src>
import functools

import jax
import jax.numpy as jnp
from jax import lax
from jax.experimental import pallas as pl
from jax.experimental.pallas import tpu as pltpu

_MIB = 1024 * 1024


def _round_up(x, m):
    return ((x + m - 1) // m) * m


def _vmem_capacity_bytes():
    """Physical VMEM of the current TPU generation (conservative fallback)."""
    try:
        info = pltpu.get_tpu_info()
        for attr in ("vmem_capacity_bytes", "vmem_size_bytes", "vmem_bytes"):
            v = getattr(info, attr, None)
            if v:
                return int(v)
    except Exception:
        pass
    return 64 * _MIB  # assume the smallest (v7x-like) VMEM if unknown


def _live_bytes(tm, k_dim, e_pad, in_bytes, out_bytes):
    """VMEM live-set estimate matching the buffering actually requested."""
    return (2 * tm * k_dim * in_bytes       # x tile (double-buffered)
            + k_dim * e_pad * in_bytes      # weight (single-buffered, Buffered(1))
            + 3 * e_pad * 4                 # bias/gamma/beta (single-buffered)
            + 2 * tm * e_pad * out_bytes    # out tile (double-buffered)
            + 3 * tm * e_pad * 4)           # in-kernel f32 temporaries


def _choose_tile_m(m_rows, k_dim, e_pad, in_bytes, out_bytes, sub,
                   vmem_budget, min_steps):
    """Largest row tile whose live set fits the VMEM budget.

    `min_steps` guarantees enough grid steps for pipelining (>=4 on the v7x
    megacore so each TensorCore has an i+1 block to prefetch).
    """
    cap = max(sub, _round_up(m_rows, sub))                        # cover-all cap
    step_cap = max(sub, _round_up(pl.cdiv(m_rows, min_steps), sub))
    chosen = sub
    for tm in (2048, 1024, 512, 256, 128, 64, 32, 16, 8):
        if tm % sub:
            continue
        tm = min(tm, cap, step_cap)
        if _live_bytes(tm, k_dim, e_pad, in_bytes, out_bytes) <= vmem_budget:
            chosen = tm
            break
    # Prefer a nearby exact divisor of M: no ragged last tile at all.
    if m_rows % chosen:
        for tm in range(chosen - sub, 0, -sub):
            if m_rows % tm == 0:
                if 2 * tm >= chosen:      # only if we lose < 2x tile size
                    chosen = tm
                break
    return chosen


def _patch_embed_kernel(x_ref, w_ref, b_ref, g_ref, beta_ref, o_ref, *,
                        eps, e_true, e_pad):
    # x_ref: (TM, K) compute dtype; w_ref: (K, Ep) compute dtype;
    # b/g/beta: (1, Ep) f32; o_ref: (TM, Ep) out dtype.
    y = jnp.dot(x_ref[...], w_ref[...], preferred_element_type=jnp.float32)
    y = y + b_ref[...]                                   # broadcast (1, Ep)
    inv_e = 1.0 / float(e_true)                          # static python scalar
    mean = jnp.sum(y, axis=-1, keepdims=True) * inv_e
    # Centered (two-pass) variance — safer than E[y^2]-E[y]^2; the extra XLU
    # reduce hides under the MXU.  Padded E columns have y == 0 (zero weight /
    # bias) but (y - mean) != 0, so mask them out when E is padded.
    d = y - mean
    if e_pad != e_true:
        col = lax.broadcasted_iota(jnp.int32, d.shape, dimension=1)
        d = jnp.where(col < e_true, d, 0.0)
    var = jnp.sum(d * d, axis=-1, keepdims=True) * inv_e
    scale = lax.rsqrt(var + eps)
    # Padded gamma/beta are zero -> padded output columns are exactly 0 and
    # get sliced off by the wrapper.
    o_ref[...] = ((y - mean) * scale * g_ref[...] + beta_ref[...]).astype(o_ref.dtype)


def patch_embed_pallas(x, w, b, gamma, beta, *, patch_size, eps=1e-6,
                       compute_dtype=jnp.bfloat16, out_dtype=None,
                       tile_m=None, vmem_budget_bytes=None):
    """PatchEmbed forward: Conv2d(p, stride=p) + flatten(2).transpose(1,2) + LN.

    x: (B, C, H, W).
    w: (E, C, p, p) conv weight, or a pre-transposed (K, E) matrix
       (K = C*p*p, rows in (C, ph, pw) order) to skip the per-call transpose.
    b / gamma / beta: (E,).
    Returns (B, N, E) in `out_dtype` (default x.dtype, matching the module).
    The matmul runs in `compute_dtype` (bf16 default, f32 accumulation);
    LayerNorm statistics stay in f32.
    """
    B, C, H, W = x.shape
    p = patch_size
    gh, gw = H // p, W // p
    N = gh * gw
    K = C * p * p

    if w.ndim == 2:                      # pre-transposed (K, E) weight
        E = w.shape[1]
        wm = w.astype(compute_dtype)
    else:                                # (E, C, p, p) conv weight
        E = w.shape[0]
        # TODO(synk): for inference, cache this transposed/cast weight outside
        # the per-call path instead of re-deriving it every forward.
        wm = w.astype(compute_dtype).reshape(E, K).T
    out_dtype = x.dtype if out_dtype is None else jnp.dtype(out_dtype)

    in_bytes = jnp.dtype(compute_dtype).itemsize
    out_bytes = jnp.dtype(out_dtype).itemsize
    sub = 8 if in_bytes >= 4 else 16                    # sublane packing multiple

    # --- glue: im2col in the narrow compute dtype (halves transpose traffic).
    # (B, C, gh, p, gw, p) -> (B, gh, gw, C, p, p) -> (B*N, K), K in (c, ph, pw)
    # order to match the flattened conv weight.
    xp = (x.astype(compute_dtype)
          .reshape(B, C, gh, p, gw, p)
          .transpose(0, 2, 4, 1, 3, 5)
          .reshape(B * N, K))
    # NOTE: if profiling shows the cast + transpose splitting into multiple XLA
    # fusions, CompilerParams(allow_input_fusion=[0]) or NHWC input (pure
    # reshape, no transpose) are the next knobs to try.

    # Pad only E to a multiple of 128 (weight-side, cheap) for lane-dense stores.
    E_pad = _round_up(E, 128)
    if E_pad != E:
        wm = jnp.pad(wm, ((0, 0), (0, E_pad - E)))

    def _vec(v):
        v = v.astype(jnp.float32)
        if E_pad != E:
            v = jnp.pad(v, (0, E_pad - E))
        return v.reshape(1, E_pad)

    b2, g2, be2 = _vec(b), _vec(gamma), _vec(beta)

    # Generation-aware tiling / VMEM accounting.
    M = B * N
    vmem_cap = _vmem_capacity_bytes()
    big_vmem = vmem_cap >= 100 * _MIB                  # v5e / v6e: 128 MiB VMEM
    if vmem_budget_bytes is None:
        vmem_budget_bytes = 48 * _MIB if big_vmem else 22 * _MIB
    min_steps = 2 if big_vmem else 4                   # v7x megacore: >=2 steps/core
    if tile_m is None:
        tile_m = _choose_tile_m(M, K, E_pad, in_bytes, out_bytes, sub,
                                vmem_budget_bytes, min_steps)
    live_bytes = _live_bytes(tile_m, K, E_pad, in_bytes, out_bytes)
    vmem_limit = max(int(live_bytes * 1.25) + 2 * _MIB, 16 * _MIB)
    vmem_limit = int(min(vmem_limit, (vmem_cap * 3) // 4))

    grid = (pl.cdiv(M, tile_m),)      # ragged last tile handled by boundary masking
    const = pl.Buffered(1)            # grid-invariant blocks: drop dead 2nd buffer
    out = pl.pallas_call(
        functools.partial(_patch_embed_kernel, eps=eps, e_true=E, e_pad=E_pad),
        out_shape=jax.ShapeDtypeStruct((M, E_pad), out_dtype),
        grid_spec=pltpu.PrefetchScalarGridSpec(
            num_scalar_prefetch=0,
            grid=grid,
            in_specs=[
                pl.BlockSpec((tile_m, K), lambda i: (i, 0)),
                pl.BlockSpec((K, E_pad), lambda i: (0, 0), pipeline_mode=const),
                pl.BlockSpec((1, E_pad), lambda i: (0, 0), pipeline_mode=const),
                pl.BlockSpec((1, E_pad), lambda i: (0, 0), pipeline_mode=const),
                pl.BlockSpec((1, E_pad), lambda i: (0, 0), pipeline_mode=const),
            ],
            out_specs=pl.BlockSpec((tile_m, E_pad), lambda i: (i, 0)),
        ),
        compiler_params=pltpu.CompilerParams(
            dimension_semantics=("parallel",),
            vmem_limit_bytes=vmem_limit,
        ),
    )(xp, wm, b2, g2, be2)

    out = out if E_pad == E else out[:, :E]
    return out.reshape(B, N, E)


def patch_embed_ref(x, w, b, gamma, beta, *, patch_size, eps=1e-6):
    """Pure-JAX reference replicating the PyTorch forward pass (f32)."""
    y = lax.conv_general_dilated(
        x, w, window_strides=(patch_size, patch_size), padding="VALID",
        dimension_numbers=("NCHW", "OIHW", "NCHW"),
        precision=lax.Precision.HIGHEST)
    y = y + b.reshape(1, -1, 1, 1)
    B, E, gh, gw = y.shape
    y = y.reshape(B, E, gh * gw).transpose(0, 2, 1)        # (B, N, E)
    mean = jnp.mean(y, axis=-1, keepdims=True)
    var = jnp.mean((y - mean) ** 2, axis=-1, keepdims=True)
    return (y - mean) * lax.rsqrt(var + eps) * gamma + beta


if __name__ == "__main__":
    # Small config consistent with the module: img 16x16, patch 4, 4 channels,
    # embed_dim 128.
    B, C, H, W = 2, 4, 16, 16
    P = 4
    E = 128
    N = (H // P) * (W // P)

    key = jax.random.PRNGKey(0)
    k_x, k_w, k_b = jax.random.split(key, 3)
    x = jax.random.normal(k_x, (B, C, H, W), dtype=jnp.float32)
    # Conv2d weight/bias, deterministic init.
    fan_in = C * P * P
    bound = 1.0 / (fan_in ** 0.5)
    w = jax.random.uniform(k_w, (E, C, P, P), jnp.float32, -bound, bound)
    b = jax.random.uniform(k_b, (E,), jnp.float32, -bound, bound)
    # LayerNorm params (PyTorch default init: ones / zeros).
    gamma = jnp.ones((E,), jnp.float32)
    beta = jnp.zeros((E,), jnp.float32)

    ref = jax.block_until_ready(
        patch_embed_ref(x, w, b, gamma, beta, patch_size=P))

    # f32 compute path, f32 output: close match with the XLA conv reference.
    out32 = jax.block_until_ready(jax.jit(functools.partial(
        patch_embed_pallas, patch_size=P, compute_dtype=jnp.float32))(
            x, w, b, gamma, beta))
    assert out32.shape == (B, N, E), out32.shape
    assert jnp.allclose(out32, ref, atol=1e-2, rtol=1e-2), (
        float(jnp.max(jnp.abs(out32 - ref))))

    # Default bf16 compute path (f32 accumulation + f32 LN), f32 output.
    out = jax.block_until_ready(jax.jit(functools.partial(
        patch_embed_pallas, patch_size=P))(x, w, b, gamma, beta))
    assert out.shape == (B, N, E), out.shape
    assert out.dtype == x.dtype, out.dtype
    assert jnp.allclose(out, ref, atol=5e-2, rtol=5e-2), (
        float(jnp.max(jnp.abs(out - ref))))

    # bf16 output path (halves the dominant store stream; perf-review knob).
    out16 = jax.block_until_ready(jax.jit(functools.partial(
        patch_embed_pallas, patch_size=P, out_dtype=jnp.bfloat16))(
            x, w, b, gamma, beta))
    assert out16.shape == (B, N, E), out16.shape
    assert out16.dtype == jnp.bfloat16, out16.dtype
    err16 = out16.astype(jnp.float32)
    assert jnp.allclose(err16, ref, atol=1e-1, rtol=1e-1), (
        float(jnp.max(jnp.abs(err16 - ref))))

    print("KERNEL_OK")
</pallas_src>

<mosaic_0001>
module attributes {stable_mosaic.version = 11 : i64} {
  func.func @_patch_embed_kernel(%arg0: i32, %arg1: memref<8x64xf32, #tpu.memory_space<vmem>>, %arg2: memref<64x128xf32, #tpu.memory_space<vmem>>, %arg3: memref<1x128xf32, #tpu.memory_space<vmem>>, %arg4: memref<1x128xf32, #tpu.memory_space<vmem>>, %arg5: memref<1x128xf32, #tpu.memory_space<vmem>>, %arg6: memref<8x128xf32, #tpu.memory_space<vmem>>) attributes {dimension_semantics = [#tpu.dimension_semantics<parallel>], iteration_bounds = array<i64: 4>, scalar_prefetch = 0 : i64, scratch_operands = 0 : i64, tpu.core_type = #tpu.core_type<tc>, window_params = [{transform_indices = @transform_0, window_bounds = array<i64: 8, 64>}, {pipeline_mode = #tpu.pipeline_mode<synchronous>, transform_indices = @transform_1, window_bounds = array<i64: 64, 128>}, {pipeline_mode = #tpu.pipeline_mode<synchronous>, transform_indices = @transform_2, window_bounds = array<i64: 1, 128>}, {pipeline_mode = #tpu.pipeline_mode<synchronous>, transform_indices = @transform_3, window_bounds = array<i64: 1, 128>}, {pipeline_mode = #tpu.pipeline_mode<synchronous>, transform_indices = @transform_4, window_bounds = array<i64: 1, 128>}, {transform_indices = @transform_5, window_bounds = array<i64: 8, 128>}]} {
    %c0 = arith.constant 0 : index
    %c0_0 = arith.constant 0 : index
    %0 = vector.load %arg1[%c0, %c0_0] : memref<8x64xf32, #tpu.memory_space<vmem>>, vector<8x64xf32>
    %c0_1 = arith.constant 0 : index
    %c0_2 = arith.constant 0 : index
    %1 = vector.load %arg2[%c0_1, %c0_2] : memref<64x128xf32, #tpu.memory_space<vmem>>, vector<64x128xf32>
    %cst = arith.constant dense<0.000000e+00> : vector<8x128xf32>
    %2 = tpu.matmul %0, %1, %cst {dimension_numbers = #tpu.dot_dimension_numbers<[1], [0], [0], [1], [0, 0, 1, 1], [], []>} : vector<8x64xf32>, vector<64x128xf32>, vector<8x128xf32> -> vector<8x128xf32>
    %c0_3 = arith.constant 0 : index
    %c0_4 = arith.constant 0 : index
    %3 = vector.load %arg3[%c0_3, %c0_4] : memref<1x128xf32, #tpu.memory_space<vmem>>, vector<1x128xf32>
    %4 = vector.broadcast %3 : vector<1x128xf32> to vector<8x128xf32>
    %5 = arith.addf %2, %4 : vector<8x128xf32>
    %cst_5 = arith.constant dense<0.000000e+00> : vector<8xf32>
    %6 = vector.multi_reduction <add>, %5, %cst_5 [1] : vector<8x128xf32> to vector<8xf32>
    %7 = vector.shape_cast %6 : vector<8xf32> to vector<8x1xf32>
    %cst_6 = arith.constant 7.812500e-03 : f32
    %8 = vector.broadcast %cst_6 : f32 to vector<8x1xf32>
    %9 = arith.mulf %7, %8 : vector<8x1xf32>
    %10 = vector.broadcast %9 : vector<8x1xf32> to vector<8x128xf32>
    %11 = arith.subf %5, %10 : vector<8x128xf32>
    %12 = arith.mulf %11, %11 : vector<8x128xf32>
    %cst_7 = arith.constant dense<0.000000e+00> : vector<8xf32>
    %13 = vector.multi_reduction <add>, %12, %cst_7 [1] : vector<8x128xf32> to vector<8xf32>
    %14 = vector.shape_cast %13 : vector<8xf32> to vector<8x1xf32>
    %cst_8 = arith.constant 7.812500e-03 : f32
    %15 = vector.broadcast %cst_8 : f32 to vector<8x1xf32>
    %16 = arith.mulf %14, %15 : vector<8x1xf32>
    %cst_9 = arith.constant 9.99999997E-7 : f32
    %17 = vector.broadcast %cst_9 : f32 to vector<8x1xf32>
    %18 = arith.addf %16, %17 : vector<8x1xf32>
    %19 = math.rsqrt %18 : vector<8x1xf32>
    %20 = vector.broadcast %9 : vector<8x1xf32> to vector<8x128xf32>
    %21 = arith.subf %5, %20 : vector<8x128xf32>
    %22 = vector.broadcast %19 : vector<8x1xf32> to vector<8x128xf32>
    %23 = arith.mulf %21, %22 : vector<8x128xf32>
    %c0_10 = arith.constant 0 : index
    %c0_11 = arith.constant 0 : index
    %24 = vector.load %arg4[%c0_10, %c0_11] : memref<1x128xf32, #tpu.memory_space<vmem>>, vector<1x128xf32>
    %25 = vector.broadcast %24 : vector<1x128xf32> to vector<8x128xf32>
    %26 = arith.mulf %23, %25 : vector<8x128xf32>
    %c0_12 = arith.constant 0 : index
    %c0_13 = arith.constant 0 : index
    %27 = vector.load %arg5[%c0_12, %c0_13] : memref<1x128xf32, #tpu.memory_space<vmem>>, vector<1x128xf32>
    %28 = vector.broadcast %27 : vector<1x128xf32> to vector<8x128xf32>
    %29 = arith.addf %26, %28 : vector<8x128xf32>
    %c0_14 = arith.constant 0 : index
    %c0_15 = arith.constant 0 : index
    %30 = vector.load %arg6[%c0_14, %c0_15] : memref<8x128xf32, #tpu.memory_space<vmem>>, vector<8x128xf32>
    tpu.vector_store %arg6[%c0_14, %c0_15], %29 {strides = array<i32>} : memref<8x128xf32, #tpu.memory_space<vmem>>, vector<8x128xf32>,
    return
  }
  func.func @transform_0(%arg0: i32) -> (i32, i32) {
    %c0_i32 = arith.constant 0 : i32
    %c0_i32_0 = arith.constant 0 : i32
    return %arg0, %c0_i32 : i32, i32
  }
  func.func @transform_1(%arg0: i32) -> (i32, i32) {
    %c0_i32 = arith.constant 0 : i32
    %c0_i32_0 = arith.constant 0 : i32
    %c0_i32_1 = arith.constant 0 : i32
    return %c0_i32, %c0_i32_0 : i32, i32
  }
  func.func @transform_2(%arg0: i32) -> (i32, i32) {
    %c0_i32 = arith.constant 0 : i32
    %c0_i32_0 = arith.constant 0 : i32
    %c0_i32_1 = arith.constant 0 : i32
    return %c0_i32, %c0_i32_0 : i32, i32
  }
  func.func @transform_3(%arg0: i32) -> (i32, i32) {
    %c0_i32 = arith.constant 0 : i32
    %c0_i32_0 = arith.constant 0 : i32
    %c0_i32_1 = arith.constant 0 : i32
    return %c0_i32, %c0_i32_0 : i32, i32
  }
  func.func @transform_4(%arg0: i32) -> (i32, i32) {
    %c0_i32 = arith.constant 0 : i32
    %c0_i32_0 = arith.constant 0 : i32
    %c0_i32_1 = arith.constant 0 : i32
    return %c0_i32, %c0_i32_0 : i32, i32
  }
  func.func @transform_5(%arg0: i32) -> (i32, i32) {
    %c0_i32 = arith.constant 0 : i32
    %c0_i32_0 = arith.constant 0 : i32
    return %arg0, %c0_i32 : i32, i32
  }
}

</mosaic_0001>

<llo_original>
// kernel: patch_embed_pallas.1
$region0: #{patch_embed_pallas.1}
  #allocation0 [shape = 'u32[]', space=smem, size = 0x4, offset = 0x4, fixed_abs, tag = 'smem constant byte address 0x4 - core index']
  #allocation1 [shape = 'u32[72,128]{1,0:T(1,128)}', space=vmem, size = 0x9000, scoped, tag = 'internal scratch']
  %s0 = inlined_call_operand.vmem [shape: f32[32,64], index: 0, kind: input, shape index: {}]
  %s1 = inlined_call_operand.vmem [shape: f32[64,128], index: 1, kind: input, shape index: {}]
  %s2 = inlined_call_operand.vmem [shape: f32[1,128], index: 2, kind: input, shape index: {}]
  %s3 = inlined_call_operand.vmem [shape: f32[1,128], index: 3, kind: input, shape index: {}]
  %s4 = inlined_call_operand.vmem [shape: f32[1,128], index: 4, kind: input, shape index: {}]
  %s5 = inlined_call_operand.hbm [shape: f32[32,128], index: 5, kind: output, shape index: {}]
  %s6 = sld [smem:[#allocation0]]
  $region53: #{patch_embed_pallas.1} parent=0
    _
  %s8 = ssub.s32 1, %s6
  %s9 = scalar_select 0, %s8, %s6
  $region1: #{patch_embed_pallas.1} parent=0
    #allocation2 [shape = 'u8[8192]{0}', space=vmem, size = 0x2000, scoped, tag = 'output window, operand 0']
    #allocation3 [shape = 's32[2]{0}', space=sflag, size = 0x8, scoped, tag = 'scoped memory for patch_embed_pallas.1']
    %10 = vsyncpa [#allocation3], 0
    %s11 = scalar_lea.sflag [#allocation3], 1
    %12 = vsyncpa %s11, 0
    loop: start=0, step=1, limit=6
    $region2: #{patch_embed_pallas.1} parent=1 // loop_pre_header
      _
    $region3: #{patch_embed_pallas.1} parent=1 // loop_header
      %s14 = sphi 0, %s18
      %p15 = scmp.ge.s32.totalorder %s14, 6
      %s24 = sphi 0, %s26
      %s27 = sphi 0, %s24
      %s28 = sphi 0, %s27
      %s44 = sphi 0, %s28
      %s48 = sphi 0, %s48
      %s50 = sphi 0, %s48
      %s51 = sphi 0, %s50
      %s65 = sphi 0, %s51
      %s69 = sphi 0, %s69
      %s71 = sphi 0, %s69
      %s72 = sphi 0, %s71
      %s86 = sphi 0, %s72
      %s90 = sphi 0, %s90
      %s92 = sphi 0, %s90
      %s93 = sphi 0, %s92
      %s107 = sphi 0, %s93
      %s111 = sphi 0, %s111
      %s113 = sphi 0, %s111
      %s114 = sphi 0, %s113
      %s128 = sphi 0, %s114
      %s134 = sphi 0, %s136
      %s137 = sphi 0, %s134
      %s138 = sphi 0, %s137
      %s154 = sphi 0, %s138
    $region4: #{patch_embed_pallas.1} parent=1 // loop_header_branch
      %17 = sbr.rel (%p15) target = $region8
    $region5: #{patch_embed_pallas.1} parent=1 // loop_body
      %s19 = ssub.s32 %s14, 1
      %s20 = ssub.s32 %s14, 2
      %s21 = sadd.s32 %s14, 1
      %s22 = ssub.s32 %s14, %s21
      %p23 = scmp.eq.s32.totalorder %s22, 0
      %s25 = sadd.s32 %s24, 1
      %s26 = scalar_select %p23, %s24, %s25
      %p29 = pneg %p23
      %p30 = scmp.eq.s32.totalorder %s14, 3
      %p31 = por %p29, %p30
      %p32 = scmp.ne.s32.totalorder %s24, %s27
      %p33 = scmp.eq.s32.totalorder %s14, 0
      %p34 = por %p32, %p33
      %p35 = scmp.ne.s32.totalorder %s24, %s27
      %p36 = scmp.eq.s32.totalorder %s19, 3
      %p37 = por %p35, %p36
      %p38 = scmp.ne.s32.totalorder %s27, %s28
      %p39 = scmp.eq.s32.totalorder %s19, 0
      %p40 = por %p38, %p39
      %p41 = scmp.ne.s32.totalorder %s27, %s28
      %p42 = scmp.eq.s32.totalorder %s20, 3
      %p43 = por %p41, %p42
      %p45 = scmp.ne.s32.totalorder %s28, %s44
      %p46 = scmp.eq.s32.totalorder %s20, 0
      %p47 = por %p45, %p46
      %s49 = sadd.s32 %s48, 1
      %p52 = scmp.eq.s32.totalorder %s14, 3
      %p53 = scmp.ne.s32.totalorder %s48, %s50
      %p54 = scmp.eq.s32.totalorder %s14, 0
      %p55 = por %p53, %p54
      %p56 = scmp.ne.s32.totalorder %s48, %s50
      %p57 = scmp.eq.s32.totalorder %s19, 3
      %p58 = por %p56, %p57
      %p59 = scmp.ne.s32.totalorder %s50, %s51
      %p60 = scmp.eq.s32.totalorder %s19, 0
      %p61 = por %p59, %p60
      %p62 = scmp.ne.s32.totalorder %s50, %s51
      %p63 = scmp.eq.s32.totalorder %s20, 3
      %p64 = por %p62, %p63
      %p66 = scmp.ne.s32.totalorder %s51, %s65
      %p67 = scmp.eq.s32.totalorder %s20, 0
      %p68 = por %p66, %p67
      %s70 = sadd.s32 %s69, 1
      %p73 = scmp.eq.s32.totalorder %s14, 3
      %p74 = scmp.ne.s32.totalorder %s69, %s71
      %p75 = scmp.eq.s32.totalorder %s14, 0
      %p76 = por %p74, %p75
      %p77 = scmp.ne.s32.totalorder %s69, %s71
      %p78 = scmp.eq.s32.totalorder %s19, 3
      %p79 = por %p77, %p78
      %p80 = scmp.ne.s32.totalorder %s71, %s72
      %p81 = scmp.eq.s32.totalorder %s19, 0
      %p82 = por %p80, %p81
      %p83 = scmp.ne.s32.totalorder %s71, %s72
      %p84 = scmp.eq.s32.totalorder %s20, 3
      %p85 = por %p83, %p84
      %p87 = scmp.ne.s32.totalorder %s72, %s86
      %p88 = scmp.eq.s32.totalorder %s20, 0
      %p89 = por %p87, %p88
      %s91 = sadd.s32 %s90, 1
      %p94 = scmp.eq.s32.totalorder %s14, 3
      %p95 = scmp.ne.s32.totalorder %s90, %s92
      %p96 = scmp.eq.s32.totalorder %s14, 0
      %p97 = por %p95, %p96
      %p98 = scmp.ne.s32.totalorder %s90, %s92
      %p99 = scmp.eq.s32.totalorder %s19, 3
      %p100 = por %p98, %p99
      %p101 = scmp.ne.s32.totalorder %s92, %s93
      %p102 = scmp.eq.s32.totalorder %s19, 0
      %p103 = por %p101, %p102
      %p104 = scmp.ne.s32.totalorder %s92, %s93
      %p105 = scmp.eq.s32.totalorder %s20, 3
      %p106 = por %p104, %p105
      %p108 = scmp.ne.s32.totalorder %s93, %s107
      %p109 = scmp.eq.s32.totalorder %s20, 0
      %p110 = por %p108, %p109
      %s112 = sadd.s32 %s111, 1
      %p115 = scmp.eq.s32.totalorder %s14, 3
      %p116 = scmp.ne.s32.totalorder %s111, %s113
      %p117 = scmp.eq.s32.totalorder %s14, 0
      %p118 = por %p116, %p117
      %p119 = scmp.ne.s32.totalorder %s111, %s113
      %p120 = scmp.eq.s32.totalorder %s19, 3
      %p121 = por %p119, %p120
      %p122 = scmp.ne.s32.totalorder %s113, %s114
      %p123 = scmp.eq.s32.totalorder %s19, 0
      %p124 = por %p122, %p123
      %p125 = scmp.ne.s32.totalorder %s113, %s114
      %p126 = scmp.eq.s32.totalorder %s20, 3
      %p127 = por %p125, %p126
      %p129 = scmp.ne.s32.totalorder %s114, %s128
      %p130 = scmp.eq.s32.totalorder %s20, 0
      %p131 = por %p129, %p130
      %s132 = ssub.s32 %s14, %s21
      %p133 = scmp.eq.s32.totalorder %s132, 0
      %s135 = sadd.s32 %s134, 1
      %s136 = scalar_select %p133, %s134, %s135
      %p139 = pneg %p133
      %p140 = scmp.eq.s32.totalorder %s14, 3
      %p141 = por %p139, %p140
      %p142 = scmp.ne.s32.totalorder %s134, %s137
      %p143 = scmp.eq.s32.totalorder %s14, 0
      %p144 = por %p142, %p143
      %p145 = scmp.ne.s32.totalorder %s134, %s137
      %p146 = scmp.eq.s32.totalorder %s19, 3
      %p147 = por %p145, %p146
      %p148 = scmp.ne.s32.totalorder %s137, %s138
      %p149 = scmp.eq.s32.totalorder %s19, 0
      %p150 = por %p148, %p149
      %p151 = scmp.ne.s32.totalorder %s137, %s138
      %p152 = scmp.eq.s32.totalorder %s20, 3
      %p153 = por %p151, %p152
      %p155 = scmp.ne.s32.totalorder %s138, %s154
      %p156 = scmp.eq.s32.totalorder %s20, 0
      %p157 = por %p155, %p156
      %p158 = scmp.le.s32.totalorder 1, %s14
      %p159 = scmp.lt.s32.totalorder %s14, 5
      %p160 = pnand %p158, %p159
      %p161 = pneg %p160
      // Predicated region
      $region9: #{patch_embed_pallas.1} parent=5 // pred_check
        _
      $region10: #{patch_embed_pallas.1} parent=5 // pred_check_branch
        %163 = sbr.rel (%p160) target = $region12
      $region11: #{patch_embed_pallas.1} parent=5 // pred_region
        %s164 = ssub.s32 %s14, 1
        // Predicated region
        $region13: #{patch_embed_pallas.1} parent=11 // pred_check
          %p165 = pneg %p61
        $region14: #{patch_embed_pallas.1} parent=11 // pred_check_branch
          %167 = sbr.rel (%p165) target = $region16
        $region15: #{patch_embed_pallas.1} parent=11 // pred_region
          _
        $region16: #{patch_embed_pallas.1} parent=11 // pred_fallthru
          _
        // Predicated region
        $region17: #{patch_embed_pallas.1} parent=11 // pred_check
          %p168 = pneg %p82
        $region18: #{patch_embed_pallas.1} parent=11 // pred_check_branch
          %170 = sbr.rel (%p168) target = $region20
        $region19: #{patch_embed_pallas.1} parent=11 // pred_region
          _
        $region20: #{patch_embed_pallas.1} parent=11 // pred_fallthru
          _
        // Predicated region
        $region21: #{patch_embed_pallas.1} parent=11 // pred_check
          %p171 = pneg %p103
        $region22: #{patch_embed_pallas.1} parent=11 // pred_check_branch
          %173 = sbr.rel (%p171) target = $region24
        $region23: #{patch_embed_pallas.1} parent=11 // pred_region
          _
        $region24: #{patch_embed_pallas.1} parent=11 // pred_fallthru
          _
        // Predicated region
        $region25: #{patch_embed_pallas.1} parent=11 // pred_check
          %p174 = pneg %p124
        $region26: #{patch_embed_pallas.1} parent=11 // pred_check_branch
          %176 = sbr.rel (%p174) target = $region28
        $region27: #{patch_embed_pallas.1} parent=11 // pred_region
          _
        $region28: #{patch_embed_pallas.1} parent=11 // pred_fallthru
          _
      $region12: #{patch_embed_pallas.1} parent=5 // pred_fallthru
        _
      %p177 = scmp.lt.s32.totalorder %s14, 4
      // Predicated region
      $region29: #{patch_embed_pallas.1} parent=5 // pred_check
        %p178 = pneg %p177
      $region30: #{patch_embed_pallas.1} parent=5 // pred_check_branch
        %180 = sbr.rel (%p178) target = $region32
      $region31: #{patch_embed_pallas.1} parent=5 // pred_region
        // Predicated region
        $region33: #{patch_embed_pallas.1} parent=31 // pred_check
          %p181 = pneg %p34
        $region34: #{patch_embed_pallas.1} parent=31 // pred_check_branch
          %183 = sbr.rel (%p181) target = $region36
        $region35: #{patch_embed_pallas.1} parent=31 // pred_region
          %p184 = scmp.lt.s32.totalorder %s14, 3
          %s185 = scalar_select %p184, %s14, 3
          %s186 = smul.addr %s185, 8
          %s187 = scalar_lea.vmem %s0, %s186
        $region36: #{patch_embed_pallas.1} parent=31 // pred_fallthru
          _
      $region32: #{patch_embed_pallas.1} parent=5 // pred_fallthru
        _
      %p188 = scmp.le.s32.totalorder 1, %s14
      %p189 = scmp.lt.s32.totalorder %s14, 5
      %p190 = pnand %p188, %p189
      %p191 = pneg %p190
      // Predicated region
      $region37: #{patch_embed_pallas.1} parent=5 // pred_check
        _
      $region38: #{patch_embed_pallas.1} parent=5 // pred_check_branch
        %193 = sbr.rel (%p190) target = $region40
      $region39: #{patch_embed_pallas.1} parent=5 // pred_region
        %s194 = ssub.s32 %s14, 1
        %p195 = scmp.lt.s32.totalorder %s19, 3
        %s196 = scalar_select %p195, %s19, 3
        %s197 = smul.addr %s196, 8
        %s198 = scalar_lea.vmem %s0, %s197
        %p199 = pneg %p40
        %p200 = pneg %p37
        %p201 = pneg %p61
        %p202 = pneg %p58
        %p203 = pneg %p82
        %p204 = pneg %p79
        %p205 = pneg %p103
        %p206 = pneg %p100
        %p207 = pneg %p124
        %p208 = pneg %p121
        %p209 = pneg %p150
        %p210 = pneg %p147
        %s211 = sand.u32 %s137, 1
        %s212 = scalar_lea.sflag [#allocation3], %s211
        %s213 = sand.u32 %s137, 1
        %s214 = smul.addr %s213, 8
        %s215 = scalar_lea.vmem [#allocation2], %s214
        %p216 = scmp.lt.s32.totalorder %s19, 3
        %s217 = scalar_select %p216, %s19, 3
        %s218 = smul.addr %s217, 8
        %s219 = scalar_lea.vmem %s0, %s218
        %v220 = vld [vmem:[%s219] sm:$0xff]
        %v221 = vld [vmem:[%s1] sm:$0xff]
        %v222 = vld [vmem:[%s1 + $0x8] sm:$0xff]
        %v223 = vld [vmem:[%s1 + $0x10] sm:$0xff]
        %v224 = vld [vmem:[%s1 + $0x18] sm:$0xff]
        %v225 = vld [vmem:[%s1 + $0x20] sm:$0xff]
        %v226 = vld [vmem:[%s1 + $0x28] sm:$0xff]
        %v227 = vld [vmem:[%s1 + $0x30] sm:$0xff]
        %v228 = vld [vmem:[%s1 + $0x38] sm:$0xff]
        %v229 = vld [vmem:[%s2] sm:$0x1]
        %v231 = vperm.slane %v229, 0
        %vm233 = vcmask 523264
        %v235 = vsel %vm233, %v220, 0
        %237 = vmatpush.msra.mxu0 0.0
        %238 = vmatpush.msra.mxu0 0.0
        %239 = vmatpush.msra.mxu0 0.0
        %240 = vmatpush.msra.mxu0 0.0
        %241 = vmatpush.msra.mxu0 0.0
        %242 = vmatpush.msra.mxu0 0.0
        %243 = vmatpush.msra.mxu0 0.0
        %244 = vmatpush.msra.mxu0 0.0
        %245 = vmatpush.msra.mxu0 %v228
        %246 = vmatpush.msra.mxu0 %v227
        %247 = vmatpush.msra.mxu0 %v226
        %248 = vmatpush.msra.mxu0 %v225
        %249 = vmatpush.msra.mxu0 %v224
        %250 = vmatpush.msra.mxu0 %v223
        %251 = vmatpush.msra.mxu0 %v222
        %252 = vmatpush.msra.mxu0 %v221
        %253 = vmatmul.f32.gmra.mxu0 %v235
        %v254 = vpop.f32.mrf.mxu0
        %v255 = vadd.f32 %v231, %v254
        %256 = vdwg.mxu0
        %257 = vadd.xlane.f32.xlu0 %v255
        %v258 = vpop.xlane.xlu0 %257
        %v259 = vmul.f32 %v258, 0.0078125
        %v260 = vsub.f32 %v255, %v259
        %v261 = vmul.f32 %v260, %v260
        %262 = vadd.xlane.f32.xlu0 %v261
        %v263 = vpop.xlane.xlu0 %262
        %v264 = vmul.f32 %v263, 0.0078125
        %v265 = vadd.f32 %v264, 1e-06
        %v266 = vrsqrt.pop %v265
        %v267 = vmul.f32 %v266, %v265
        %v268 = vmul.f32 %v267, %v266
        %v269 = vmul.f32 0.5, %v268
        %v270 = vsub.f32 1.5, %v269
        %v271 = vmul.f32 %v266, %v270
        %vm272 = vweird.f32 %v265
        %vm273 = vweird.f32 %v266
        %vm274 = vmor %vm272, %vm273
        %v275 = vsel %vm274, %v266, %v271
        %v276 = vmul.f32 %v260, %v275
        %v277 = vld [vmem:[%s3] sm:$0x1]
        %v279 = vperm.slane %v277, 0
        %v281 = vmul.f32 %v276, %v279
        %v282 = vld [vmem:[%s4] sm:$0x1]
        %v284 = vperm.slane %v282, 0
        %v286 = vadd.f32 %v281, %v284
        %287 = vst [vmem:[%s215] sm:$0xff] %v286
        %s288 = sand.u32 %s137, 1
        %s289 = scalar_lea.sflag [#allocation3], %s288
        %s290 = sand.u32 %s137, 1
        %s291 = smul.addr %s290, 8
        %s292 = scalar_lea.vmem [#allocation2], %s291
        // Predicated region
        $region41: #{patch_embed_pallas.1} parent=39 // pred_check
          %p293 = pneg %p147
        $region42: #{patch_embed_pallas.1} parent=39 // pred_check_branch
          %295 = sbr.rel (%p293) target = $region44
        $region43: #{patch_embed_pallas.1} parent=39 // pred_region
          %297 = vsyncadd %s289, 0
          %s298 = smul.addr %s19, 8
          %s299 = scalar_lea.hbm %s5, %s298
          %s301 = sshll.u32 %s292, 4
          %s302 = int_to_ptr.vmem [resolvable:$true] %s301
          %s303 = sshll.u32 %s299, 4
          %s304 = int_to_ptr.hbm [resolvable:$true] %s303
          %306 = dma.vmem_to_hbm [thread:$0]  %s302, 128, %s304, %s289
        $region44: #{patch_embed_pallas.1} parent=39 // pred_fallthru
          _
      $region40: #{patch_embed_pallas.1} parent=5 // pred_fallthru
        _
      %p307 = scmp.le.s32.totalorder 2, %s14
      // Predicated region
      $region45: #{patch_embed_pallas.1} parent=5 // pred_check
        %p308 = pneg %p307
      $region46: #{patch_embed_pallas.1} parent=5 // pred_check_branch
        %310 = sbr.rel (%p308) target = $region48
      $region47: #{patch_embed_pallas.1} parent=5 // pred_region
        %s311 = ssub.s32 %s14, 2
        // Predicated region
        $region49: #{patch_embed_pallas.1} parent=47 // pred_check
          %p312 = pneg %p153
        $region50: #{patch_embed_pallas.1} parent=47 // pred_check_branch
          %314 = sbr.rel (%p312) target = $region52
        $region51: #{patch_embed_pallas.1} parent=47 // pred_region
          %s315 = sand.u32 %s138, 1
          %s316 = scalar_lea.sflag [#allocation3], %s315
          %s317 = sand.u32 %s138, 1
          %s318 = smul.addr %s317, 8
          %s319 = scalar_lea.vmem [#allocation2], %s318
          %321 = dma.done %s316, 128
        $region52: #{patch_embed_pallas.1} parent=47 // pred_fallthru
          _
      $region48: #{patch_embed_pallas.1} parent=5 // pred_fallthru
        _
    $region6: #{patch_embed_pallas.1} parent=1 // loop_footer
      %s18 = sadd.s32 1, %s14
    $region7: #{patch_embed_pallas.1} parent=1 // loop_footer_branch
      %13 = sbr.rel target = $region3
    $region8: #{patch_embed_pallas.1} parent=1 // loop_exit
      _
    %322 = vsyncpa [#allocation3], 1
    %s323 = scalar_lea.sflag [#allocation3], 1
    %324 = vsyncpa %s323, 1

</llo_original>
